<compile_context>
chip_gen: v6e
topology: v6e:2x2x1
jax: 0.10.0
libtpu: 0.0.40
codegen_flags: <defaults>
</compile_context>

<pallas_src>
import functools

import jax
import jax.numpy as jnp
from jax import lax
from jax.experimental import pallas as pl
from jax.experimental.pallas import tpu as pltpu

EPS = 1e-5
_VMEM_LIMIT = 48 * 1024 * 1024


def _round_up(v, m):
    return ((v + m - 1) // m) * m


# ---------------------------------------------------------------------------
# Kernel 1: merged-phase transposed-conv matmul + per-tile BN partial stats.
#   (Rp, 9C) @ (9C, tm) -> (Rp, tm): lane dim = tm (dense, unmasked stores),
#   bf16 operands, f32 MXU accumulation.  Rows are (parity, out-channel).
# ---------------------------------------------------------------------------
def _convmm_stats_kernel(a_ref, bt_ref, y_ref, sum_ref, sqs_ref):
    y = jnp.dot(bt_ref[...], a_ref[...], preferred_element_type=jnp.float32)
    y_ref[...] = y.astype(y_ref.dtype)          # bf16 intermediate (half HBM)
    # Per-tile partial statistics from the f32 product, lane-dense (1, Rp)
    # blocks -> each grid step owns its own stat block, grid stays "parallel".
    sum_ref[...] = jnp.sum(y, axis=1).reshape(1, -1)
    sqs_ref[...] = jnp.sum(y * y, axis=1).reshape(1, -1)


# ---------------------------------------------------------------------------
# Kernel 2: pre-folded BatchNorm scale/shift + SiLU (pure elementwise).
# ---------------------------------------------------------------------------
def _bn_silu_kernel(y_ref, scale_ref, shift_ref, o_ref):
    z = y_ref[...].astype(jnp.float32) * scale_ref[...] + shift_ref[...]
    o_ref[...] = z * jax.nn.sigmoid(z)


# ---------------------------------------------------------------------------
# Pallas drivers
# ---------------------------------------------------------------------------
def _conv_transpose_bn_silu(a, bt, gamma, beta, co, m_real, *, tm):
    """a: (9C, mp_pad) bf16, bt: (Rp, 9C) bf16 -> z: (Rp, mp_pad) f32."""
    k, mp_pad = a.shape
    rp = bt.shape[0]
    n_tiles = mp_pad // tm

    yt, psum, psqs = pl.pallas_call(
        _convmm_stats_kernel,
        out_shape=(jax.ShapeDtypeStruct((rp, mp_pad), jnp.bfloat16),
                   jax.ShapeDtypeStruct((n_tiles, 1, rp), jnp.float32),
                   jax.ShapeDtypeStruct((n_tiles, 1, rp), jnp.float32)),
        grid_spec=pltpu.PrefetchScalarGridSpec(
            num_scalar_prefetch=0,
            grid=(n_tiles,),
            in_specs=[pl.BlockSpec((k, tm), lambda i: (0, i)),
                      pl.BlockSpec((rp, k), lambda i: (0, 0))],
            out_specs=(pl.BlockSpec((rp, tm), lambda i: (0, i)),
                       pl.BlockSpec((None, 1, rp), lambda i: (i, 0, 0)),
                       pl.BlockSpec((None, 1, rp), lambda i: (i, 0, 0)))),
        compiler_params=pltpu.CompilerParams(
            dimension_semantics=("parallel",),
            vmem_limit_bytes=_VMEM_LIMIT),
    )(a, bt)

    # Fold training-mode batch stats + affine into a single per-row
    # (phase, channel) scale/shift.  O(Co) scalars, plain JAX glue.  Padded
    # columns of A are zero so they contribute nothing to the sums; the true
    # element count (4 phases * N*H*W pixels per channel) is used.
    cnt = 4.0 * m_real
    s1 = jnp.sum(psum, axis=(0, 1))[:4 * co].reshape(4, co).sum(axis=0)
    s2 = jnp.sum(psqs, axis=(0, 1))[:4 * co].reshape(4, co).sum(axis=0)
    mean = s1 / cnt
    var = jnp.maximum(s2 / cnt - mean * mean, 0.0)   # guard E[y^2]-m^2 < 0
    scale_c = gamma * lax.rsqrt(var + EPS)
    shift_c = beta - mean * scale_c
    scale = jnp.pad(jnp.tile(scale_c, 4), (0, rp - 4 * co)).reshape(rp, 1)
    shift = jnp.pad(jnp.tile(shift_c, 4), (0, rp - 4 * co)).reshape(rp, 1)

    z = pl.pallas_call(
        _bn_silu_kernel,
        out_shape=jax.ShapeDtypeStruct((rp, mp_pad), jnp.float32),
        grid_spec=pltpu.PrefetchScalarGridSpec(
            num_scalar_prefetch=0,
            grid=(n_tiles,),
            in_specs=[pl.BlockSpec((rp, tm), lambda i: (0, i)),
                      pl.BlockSpec((rp, 1), lambda i: (0, 0)),
                      pl.BlockSpec((rp, 1), lambda i: (0, 0))],
            out_specs=pl.BlockSpec((rp, tm), lambda i: (0, i))),
        compiler_params=pltpu.CompilerParams(
            dimension_semantics=("parallel",),
            vmem_limit_bytes=_VMEM_LIMIT),
    )(yt, scale, shift)
    return z


# ---------------------------------------------------------------------------
# Glue: merged sub-pixel decomposition of ConvTranspose2d(k=4, s=2, p=1).
# Each output parity (oy%2, ox%2) sees a 2x2 window of the 3x3 padded-input
# neighbourhood; sharing one 3x3-tap A across all 4 parities (zeros in B for
# the taps a parity does not use) needs 9 shifted input copies instead of 16.
# ---------------------------------------------------------------------------
def _merged_operands(x_nchw, w, rp, mp_pad):
    N, C, H, W = x_nchw.shape
    Co = w.shape[1]
    M = N * H * W

    # Single layout pass (no NHWC round trip), then spatial pad.
    xc = jnp.transpose(x_nchw, (1, 0, 2, 3))               # (C, N, H, W)
    xp = jnp.pad(xc, ((0, 0), (0, 0), (1, 1), (1, 1)))      # (C, N, H+2, W+2)

    # TODO(synk): assemble the 9 shifted views inside kernel 1 from an HBM
    # copy of xp (manual windowed DMA per tile) to avoid materializing A at
    # ~9x the input bytes in XLA.
    a_taps = []
    for dy in range(3):
        for dx in range(3):
            a_taps.append(xp[:, :, dy:dy + H, dx:dx + W].reshape(C, M))
    a = jnp.concatenate(a_taps, axis=0)                      # (9C, M)
    if mp_pad != M:
        a = jnp.pad(a, ((0, 0), (0, mp_pad - M)))

    b_rows = []
    for py in range(2):
        for px in range(2):
            taps = []
            for dy in range(3):
                for dx in range(3):
                    ky = py + 3 - 2 * dy
                    kx = px + 3 - 2 * dx
                    if 0 <= ky <= 3 and 0 <= kx <= 3:
                        taps.append(w[:, :, ky, kx])          # (C, Co)
                    else:
                        taps.append(jnp.zeros((C, Co), w.dtype))
            b_rows.append(jnp.concatenate(taps, axis=0).T)    # (Co, 9C)
    bt = jnp.concatenate(b_rows, axis=0)                      # (4Co, 9C)
    bt = jnp.pad(bt, ((0, rp - 4 * Co), (0, 0)))
    return a.astype(jnp.bfloat16), bt.astype(jnp.bfloat16)


@functools.partial(jax.jit, static_argnames=("tm",))
def up_forward(x_nchw, feature_map_nchw, w, bias, gamma, beta, *, tm=4096):
    # bias: per-channel constant -> shifts only the batch mean, which
    # training-mode BatchNorm removes exactly, so it cannot affect the output.
    del bias
    N, C, H, W = x_nchw.shape
    Co = w.shape[1]
    OH, OW = 2 * H, 2 * W
    M = N * H * W
    rp = max(8, _round_up(4 * Co, 8))          # sublane-pad merged row dim

    # Big tiles (overhead amortization) but at least two tiles when possible
    # so both v7x TensorCores get work; inert on single-TC v5e/v6e.
    tm_eff = max(128, min(tm, _round_up(pl.cdiv(M, 2), 128)))
    mp_pad = _round_up(M, tm_eff)

    a, bt = _merged_operands(x_nchw, w, rp, mp_pad)
    z = _conv_transpose_bn_silu(a, bt, gamma, beta, Co, float(M), tm=tm_eff)

    # Depth-to-space reassembly + NCHW + skip concat (pure data movement).
    # TODO(synk): fuse this stride-2 interleave + concat into a Pallas
    # epilogue to remove the extra XLA passes over the output tensor.
    z = z[:4 * Co, :M].reshape(2, 2, Co, N, H, W)            # (py,px,Co,N,H,W)
    z = jnp.transpose(z, (3, 2, 4, 0, 5, 1)).reshape(N, Co, OH, OW)
    return jnp.concatenate([z, feature_map_nchw], axis=1)


# ---------------------------------------------------------------------------
# Pure-JAX f32 reference (same math as the PyTorch module in training mode)
# ---------------------------------------------------------------------------
def reference_up(x, feature_map, w, bias, gamma, beta):
    w_flip = jnp.transpose(w[:, :, ::-1, ::-1], (1, 0, 2, 3))   # (Co, C, 4, 4)
    conv = lax.conv_general_dilated(
        x, w_flip, window_strides=(1, 1), padding=((2, 2), (2, 2)),
        lhs_dilation=(2, 2), dimension_numbers=("NCHW", "OIHW", "NCHW"))
    conv = conv + bias[None, :, None, None]
    mean = conv.mean(axis=(0, 2, 3), keepdims=True)
    var = jnp.mean((conv - mean) ** 2, axis=(0, 2, 3), keepdims=True)
    z = gamma[None, :, None, None] * (conv - mean) / jnp.sqrt(var + EPS) \
        + beta[None, :, None, None]
    silu = z * jax.nn.sigmoid(z)
    return jnp.concatenate([silu, feature_map], axis=1)


# ---------------------------------------------------------------------------
if __name__ == "__main__":
    key = jax.random.PRNGKey(0)
    kx, kf, kw, kb, kg, kbe = jax.random.split(key, 6)

    N, C, H, W = 2, 4, 16, 16              # channel = 4
    Co = C // 2
    OH, OW = 2 * H, 2 * W

    x = jax.random.normal(kx, (N, C, H, W), jnp.float32)
    feature_map = jax.random.normal(kf, (N, Co, OH, OW), jnp.float32)

    # ConvTranspose2d weight layout: (in_channels, out_channels, kH, kW)
    w = 0.1 * jax.random.normal(kw, (C, Co, 4, 4), jnp.float32)
    bias = 0.1 * jax.random.normal(kb, (Co,), jnp.float32)
    gamma = 1.0 + 0.1 * jax.random.normal(kg, (Co,), jnp.float32)
    beta = 0.1 * jax.random.normal(kbe, (Co,), jnp.float32)

    out = up_forward(x, feature_map, w, bias, gamma, beta)
    out = jax.block_until_ready(out)
    assert out.shape == (N, 2 * Co, OH, OW), out.shape

    ref = reference_up(x, feature_map, w, bias, gamma, beta)
    # bf16 MXU operands + bf16 intermediate -> small drift vs f32 reference.
    if not jnp.allclose(out, ref, rtol=2e-2, atol=2e-2):
        err = float(jnp.max(jnp.abs(out - ref)))
        raise AssertionError(f"Pallas output mismatch, max abs err {err}")

    print("KERNEL_OK")
</pallas_src>

<mosaic_0001>
module attributes {stable_mosaic.version = 11 : i64} {
  func.func @_convmm_stats_kernel(%arg0: i32, %arg1: memref<36x256xbf16, #tpu.memory_space<vmem>>, %arg2: memref<8x36xbf16, #tpu.memory_space<vmem>>, %arg3: memref<8x256xbf16, #tpu.memory_space<vmem>>, %arg4: memref<1x1x8xf32, #tpu.memory_space<vmem>>, %arg5: memref<1x1x8xf32, #tpu.memory_space<vmem>>) attributes {dimension_semantics = [#tpu.dimension_semantics<parallel>], iteration_bounds = array<i64: 2>, scalar_prefetch = 0 : i64, scratch_operands = 0 : i64, tpu.core_type = #tpu.core_type<tc>, window_params = [{transform_indices = @transform_0, window_bounds = array<i64: 36, 256>}, {pipeline_mode = #tpu.pipeline_mode<synchronous>, transform_indices = @transform_1, window_bounds = array<i64: 8, 36>}, {transform_indices = @transform_2, window_bounds = array<i64: 8, 256>}, {transform_indices = @transform_3, window_bounds = array<i64: 1, 1, 8>}, {transform_indices = @transform_4, window_bounds = array<i64: 1, 1, 8>}]} {
    %c0 = arith.constant 0 : index
    %c0_0 = arith.constant 0 : index
    %0 = vector.load %arg2[%c0, %c0_0] : memref<8x36xbf16, #tpu.memory_space<vmem>>, vector<8x36xbf16>
    %c0_1 = arith.constant 0 : index
    %c0_2 = arith.constant 0 : index
    %1 = vector.load %arg1[%c0_1, %c0_2] : memref<36x256xbf16, #tpu.memory_space<vmem>>, vector<36x256xbf16>
    %cst = arith.constant dense<0.000000e+00> : vector<8x256xf32>
    %2 = tpu.matmul %0, %1, %cst {dimension_numbers = #tpu.dot_dimension_numbers<[1], [0], [0], [1], [0, 0, 1, 1], [], []>} : vector<8x36xbf16>, vector<36x256xbf16>, vector<8x256xf32> -> vector<8x256xf32>
    %3 = arith.truncf %2 : vector<8x256xf32> to vector<8x256xbf16>
    %c0_3 = arith.constant 0 : index
    %c0_4 = arith.constant 0 : index
    %4 = vector.load %arg3[%c0_3, %c0_4] : memref<8x256xbf16, #tpu.memory_space<vmem>>, vector<8x256xbf16>
    tpu.vector_store %arg3[%c0_3, %c0_4], %3 {strides = array<i32>} : memref<8x256xbf16, #tpu.memory_space<vmem>>, vector<8x256xbf16>,
    %cst_5 = arith.constant dense<0.000000e+00> : vector<8xf32>
    %5 = vector.multi_reduction <add>, %2, %cst_5 [1] : vector<8x256xf32> to vector<8xf32>
    %6 = vector.shape_cast %5 : vector<8xf32> to vector<1x8xf32>
    %c0_6 = arith.constant 0 : index
    %c0_7 = arith.constant 0 : index
    %c0_8 = arith.constant 0 : index
    %7 = vector.load %arg4[%c0_6, %c0_7, %c0_8] : memref<1x1x8xf32, #tpu.memory_space<vmem>>, vector<1x1x8xf32>
    %8 = vector.shape_cast %7 : vector<1x1x8xf32> to vector<1x8xf32>
    %9 = vector.shape_cast %6 : vector<1x8xf32> to vector<1x1x8xf32>
    tpu.vector_store %arg4[%c0_6, %c0_7, %c0_8], %9 {strides = array<i32>} : memref<1x1x8xf32, #tpu.memory_space<vmem>>, vector<1x1x8xf32>,
    %10 = arith.mulf %2, %2 : vector<8x256xf32>
    %cst_9 = arith.constant dense<0.000000e+00> : vector<8xf32>
    %11 = vector.multi_reduction <add>, %10, %cst_9 [1] : vector<8x256xf32> to vector<8xf32>
    %12 = vector.shape_cast %11 : vector<8xf32> to vector<1x8xf32>
    %c0_10 = arith.constant 0 : index
    %c0_11 = arith.constant 0 : index
    %c0_12 = arith.constant 0 : index
    %13 = vector.load %arg5[%c0_10, %c0_11, %c0_12] : memref<1x1x8xf32, #tpu.memory_space<vmem>>, vector<1x1x8xf32>
    %14 = vector.shape_cast %13 : vector<1x1x8xf32> to vector<1x8xf32>
    %15 = vector.shape_cast %12 : vector<1x8xf32> to vector<1x1x8xf32>
    tpu.vector_store %arg5[%c0_10, %c0_11, %c0_12], %15 {strides = array<i32>} : memref<1x1x8xf32, #tpu.memory_space<vmem>>, vector<1x1x8xf32>,
    return
  }
  func.func @transform_0(%arg0: i32) -> (i32, i32) {
    %c0_i32 = arith.constant 0 : i32
    %c0_i32_0 = arith.constant 0 : i32
    return %c0_i32, %arg0 : i32, i32
  }
  func.func @transform_1(%arg0: i32) -> (i32, i32) {
    %c0_i32 = arith.constant 0 : i32
    %c0_i32_0 = arith.constant 0 : i32
    %c0_i32_1 = arith.constant 0 : i32
    return %c0_i32, %c0_i32_0 : i32, i32
  }
  func.func @transform_2(%arg0: i32) -> (i32, i32) {
    %c0_i32 = arith.constant 0 : i32
    %c0_i32_0 = arith.constant 0 : i32
    return %c0_i32, %arg0 : i32, i32
  }
  func.func @transform_3(%arg0: i32) -> (i32, i32, i32) {
    %c0_i32 = arith.constant 0 : i32
    %c0_i32_0 = arith.constant 0 : i32
    %c0_i32_1 = arith.constant 0 : i32
    return %arg0, %c0_i32, %c0_i32_0 : i32, i32, i32
  }
  func.func @transform_4(%arg0: i32) -> (i32, i32, i32) {
    %c0_i32 = arith.constant 0 : i32
    %c0_i32_0 = arith.constant 0 : i32
    %c0_i32_1 = arith.constant 0 : i32
    return %arg0, %c0_i32, %c0_i32_0 : i32, i32, i32
  }
}

module attributes {stable_mosaic.version = 11 : i64} {
  func.func @_bn_silu_kernel(%arg0: i32, %arg1: memref<8x256xbf16, #tpu.memory_space<vmem>>, %arg2: memref<8x1xf32, #tpu.memory_space<vmem>>, %arg3: memref<8x1xf32, #tpu.memory_space<vmem>>, %arg4: memref<8x256xf32, #tpu.memory_space<vmem>>) attributes {dimension_semantics = [#tpu.dimension_semantics<parallel>], iteration_bounds = array<i64: 2>, scalar_prefetch = 0 : i64, scratch_operands = 0 : i64, tpu.core_type = #tpu.core_type<tc>, window_params = [{transform_indices = @transform_0, window_bounds = array<i64: 8, 256>}, {pipeline_mode = #tpu.pipeline_mode<synchronous>, transform_indices = @transform_1, window_bounds = array<i64: 8, 1>}, {pipeline_mode = #tpu.pipeline_mode<synchronous>, transform_indices = @transform_2, window_bounds = array<i64: 8, 1>}, {transform_indices = @transform_3, window_bounds = array<i64: 8, 256>}]} {
    %c0 = arith.constant 0 : index
    %c0_0 = arith.constant 0 : index
    %0 = vector.load %arg1[%c0, %c0_0] : memref<8x256xbf16, #tpu.memory_space<vmem>>, vector<8x256xbf16>
    %1 = arith.extf %0 : vector<8x256xbf16> to vector<8x256xf32>
    %c0_1 = arith.constant 0 : index
    %c0_2 = arith.constant 0 : index
    %2 = vector.load %arg2[%c0_1, %c0_2] : memref<8x1xf32, #tpu.memory_space<vmem>>, vector<8x1xf32>
    %3 = vector.broadcast %2 : vector<8x1xf32> to vector<8x256xf32>
    %4 = arith.mulf %1, %3 : vector<8x256xf32>
    %c0_3 = arith.constant 0 : index
    %c0_4 = arith.constant 0 : index
    %5 = vector.load %arg3[%c0_3, %c0_4] : memref<8x1xf32, #tpu.memory_space<vmem>>, vector<8x1xf32>
    %6 = vector.broadcast %5 : vector<8x1xf32> to vector<8x256xf32>
    %7 = arith.addf %4, %6 : vector<8x256xf32>
    %8 = arith.negf %7 : vector<8x256xf32>
    %9 = math.exp %8 : vector<8x256xf32>
    %cst = arith.constant 1.000000e+00 : f32
    %10 = vector.broadcast %cst : f32 to vector<8x256xf32>
    %11 = arith.addf %10, %9 : vector<8x256xf32>
    %12 = arith.divf %10, %11 : vector<8x256xf32>
    %13 = arith.mulf %7, %12 : vector<8x256xf32>
    %c0_5 = arith.constant 0 : index
    %c0_6 = arith.constant 0 : index
    %14 = vector.load %arg4[%c0_5, %c0_6] : memref<8x256xf32, #tpu.memory_space<vmem>>, vector<8x256xf32>
    tpu.vector_store %arg4[%c0_5, %c0_6], %13 {strides = array<i32>} : memref<8x256xf32, #tpu.memory_space<vmem>>, vector<8x256xf32>,
    return
  }
  func.func @transform_0(%arg0: i32) -> (i32, i32) {
    %c0_i32 = arith.constant 0 : i32
    %c0_i32_0 = arith.constant 0 : i32
    return %c0_i32, %arg0 : i32, i32
  }
  func.func @transform_1(%arg0: i32) -> (i32, i32) {
    %c0_i32 = arith.constant 0 : i32
    %c0_i32_0 = arith.constant 0 : i32
    %c0_i32_1 = arith.constant 0 : i32
    return %c0_i32, %c0_i32_0 : i32, i32
  }
  func.func @transform_2(%arg0: i32) -> (i32, i32) {
    %c0_i32 = arith.constant 0 : i32
    %c0_i32_0 = arith.constant 0 : i32
    %c0_i32_1 = arith.constant 0 : i32
    return %c0_i32, %c0_i32_0 : i32, i32
  }
  func.func @transform_3(%arg0: i32) -> (i32, i32) {
    %c0_i32 = arith.constant 0 : i32
    %c0_i32_0 = arith.constant 0 : i32
    return %c0_i32, %arg0 : i32, i32
  }
}

</mosaic_0001>

<llo_original>
// kernel: tile.18
$region0: #{tile.18}
  #allocation0 [shape = 's32[1]{0}', space=sflag, size = 0x4, scoped, tag = 'scoped memory for tile.18']
  %s0 = inlined_call_operand.vmem [shape: f32[2], index: 0, kind: input, shape index: {}]
  %s1 = inlined_call_operand.vmem [shape: f32[4,2], index: 1, kind: output, shape index: {}]
  // Predicated region
  $region2: #{tile.18} parent=0 // pred_check
    _
  $region3: #{tile.18} parent=0 // pred_check_branch
    %3 = sbr.rel (0) target = $region5
  $region4: #{tile.18} parent=0 // pred_region
    _
  $region5: #{tile.18} parent=0 // pred_fallthru
    _
  %v4 = vld [vmem:[%s0] ss:$0 sm:$0xff]
  %5 = vst [vmem:[%s1] sm:$0xf] %v4

// kernel: up_forward.3
$region0: #{up_forward.3}
  #allocation0 [shape = 'u32[]', space=smem, size = 0x4, offset = 0x4, fixed_abs, tag = 'smem constant byte address 0x4 - core index']
  #allocation1 [shape = 'u32[144,128]{1,0:T(1,128)}', space=vmem, size = 0x12000, scoped, tag = 'internal scratch']
  %s0 = inlined_call_operand.vmem [shape: bf16[8,512], index: 0, kind: input, shape index: {}]
  %s1 = inlined_call_operand.vmem [shape: f32[8,1], index: 1, kind: input, shape index: {}]
  %s2 = inlined_call_operand.vmem [shape: f32[8,1], index: 2, kind: input, shape index: {}]
  %s3 = inlined_call_operand.vmem [shape: f32[8,512], index: 3, kind: output, shape index: {}]
  %s4 = sld [smem:[#allocation0]]
  $region45: #{up_forward.3} parent=0
    _
  %s6 = ssub.s32 1, %s4
  %s7 = scalar_select 0, %s6, %s4
  loop: start=0, step=1, limit=4
  $region2: #{up_forward.3} parent=0 // loop_pre_header
    _
  $region3: #{up_forward.3} parent=0 // loop_header
    %s9 = sphi 0, %s13
    %p10 = scmp.ge.s32.totalorder %s9, 4
    %s19 = sphi 0, %s21
    %s22 = sphi 0, %s19
    %s23 = sphi 0, %s22
    %s39 = sphi 0, %s23
    %s43 = sphi 0, %s43
    %s45 = sphi 0, %s43
    %s46 = sphi 0, %s45
    %s60 = sphi 0, %s46
    %s64 = sphi 0, %s64
    %s66 = sphi 0, %s64
    %s67 = sphi 0, %s66
    %s81 = sphi 0, %s67
    %s87 = sphi 0, %s89
    %s90 = sphi 0, %s87
    %s91 = sphi 0, %s90
    %s107 = sphi 0, %s91
  $region4: #{up_forward.3} parent=0 // loop_header_branch
    %12 = sbr.rel (%p10) target = $region8
  $region5: #{up_forward.3} parent=0 // loop_body
    %s14 = ssub.s32 %s9, 1
    %s15 = ssub.s32 %s9, 2
    %s16 = sadd.s32 %s9, 1
    %s17 = ssub.s32 %s9, %s16
    %p18 = scmp.eq.s32.totalorder %s17, 0
    %s20 = sadd.s32 %s19, 1
    %s21 = scalar_select %p18, %s19, %s20
    %p24 = pneg %p18
    %p25 = scmp.eq.s32.totalorder %s9, 1
    %p26 = por %p24, %p25
    %p27 = scmp.ne.s32.totalorder %s19, %s22
    %p28 = scmp.eq.s32.totalorder %s9, 0
    %p29 = por %p27, %p28
    %p30 = scmp.ne.s32.totalorder %s19, %s22
    %p31 = scmp.eq.s32.totalorder %s14, 1
    %p32 = por %p30, %p31
    %p33 = scmp.ne.s32.totalorder %s22, %s23
    %p34 = scmp.eq.s32.totalorder %s14, 0
    %p35 = por %p33, %p34
    %p36 = scmp.ne.s32.totalorder %s22, %s23
    %p37 = scmp.eq.s32.totalorder %s15, 1
    %p38 = por %p36, %p37
    %p40 = scmp.ne.s32.totalorder %s23, %s39
    %p41 = scmp.eq.s32.totalorder %s15, 0
    %p42 = por %p40, %p41
    %s44 = sadd.s32 %s43, 1
    %p47 = scmp.eq.s32.totalorder %s9, 1
    %p48 = scmp.ne.s32.totalorder %s43, %s45
    %p49 = scmp.eq.s32.totalorder %s9, 0
    %p50 = por %p48, %p49
    %p51 = scmp.ne.s32.totalorder %s43, %s45
    %p52 = scmp.eq.s32.totalorder %s14, 1
    %p53 = por %p51, %p52
    %p54 = scmp.ne.s32.totalorder %s45, %s46
    %p55 = scmp.eq.s32.totalorder %s14, 0
    %p56 = por %p54, %p55
    %p57 = scmp.ne.s32.totalorder %s45, %s46
    %p58 = scmp.eq.s32.totalorder %s15, 1
    %p59 = por %p57, %p58
    %p61 = scmp.ne.s32.totalorder %s46, %s60
    %p62 = scmp.eq.s32.totalorder %s15, 0
    %p63 = por %p61, %p62
    %s65 = sadd.s32 %s64, 1
    %p68 = scmp.eq.s32.totalorder %s9, 1
    %p69 = scmp.ne.s32.totalorder %s64, %s66
    %p70 = scmp.eq.s32.totalorder %s9, 0
    %p71 = por %p69, %p70
    %p72 = scmp.ne.s32.totalorder %s64, %s66
    %p73 = scmp.eq.s32.totalorder %s14, 1
    %p74 = por %p72, %p73
    %p75 = scmp.ne.s32.totalorder %s66, %s67
    %p76 = scmp.eq.s32.totalorder %s14, 0
    %p77 = por %p75, %p76
    %p78 = scmp.ne.s32.totalorder %s66, %s67
    %p79 = scmp.eq.s32.totalorder %s15, 1
    %p80 = por %p78, %p79
    %p82 = scmp.ne.s32.totalorder %s67, %s81
    %p83 = scmp.eq.s32.totalorder %s15, 0
    %p84 = por %p82, %p83
    %s85 = ssub.s32 %s9, %s16
    %p86 = scmp.eq.s32.totalorder %s85, 0
    %s88 = sadd.s32 %s87, 1
    %s89 = scalar_select %p86, %s87, %s88
    %p92 = pneg %p86
    %p93 = scmp.eq.s32.totalorder %s9, 1
    %p94 = por %p92, %p93
    %p95 = scmp.ne.s32.totalorder %s87, %s90
    %p96 = scmp.eq.s32.totalorder %s9, 0
    %p97 = por %p95, %p96
    %p98 = scmp.ne.s32.totalorder %s87, %s90
    %p99 = scmp.eq.s32.totalorder %s14, 1
    %p100 = por %p98, %p99
    %p101 = scmp.ne.s32.totalorder %s90, %s91
    %p102 = scmp.eq.s32.totalorder %s14, 0
    %p103 = por %p101, %p102
    %p104 = scmp.ne.s32.totalorder %s90, %s91
    %p105 = scmp.eq.s32.totalorder %s15, 1
    %p106 = por %p104, %p105
    %p108 = scmp.ne.s32.totalorder %s91, %s107
    %p109 = scmp.eq.s32.totalorder %s15, 0
    %p110 = por %p108, %p109
    %p111 = scmp.le.s32.totalorder 1, %s9
    %p112 = scmp.lt.s32.totalorder %s9, 3
    %p113 = pnand %p111, %p112
    %p114 = pneg %p113
    // Predicated region
    $region9: #{up_forward.3} parent=5 // pred_check
      _
    $region10: #{up_forward.3} parent=5 // pred_check_branch
      %116 = sbr.rel (%p113) target = $region12
    $region11: #{up_forward.3} parent=5 // pred_region
      %s117 = ssub.s32 %s9, 1
      // Predicated region
      $region13: #{up_forward.3} parent=11 // pred_check
        %p118 = pneg %p56
      $region14: #{up_forward.3} parent=11 // pred_check_branch
        %120 = sbr.rel (%p118) target = $region16
      $region15: #{up_forward.3} parent=11 // pred_region
        _
      $region16: #{up_forward.3} parent=11 // pred_fallthru
        _
      // Predicated region
      $region17: #{up_forward.3} parent=11 // pred_check
        %p121 = pneg %p77
      $region18: #{up_forward.3} parent=11 // pred_check_branch
        %123 = sbr.rel (%p121) target = $region20
      $region19: #{up_forward.3} parent=11 // pred_region
        _
      $region20: #{up_forward.3} parent=11 // pred_fallthru
        _
    $region12: #{up_forward.3} parent=5 // pred_fallthru
      _
    %p124 = scmp.lt.s32.totalorder %s9, 2
    // Predicated region
    $region21: #{up_forward.3} parent=5 // pred_check
      %p125 = pneg %p124
    $region22: #{up_forward.3} parent=5 // pred_check_branch
      %127 = sbr.rel (%p125) target = $region24
    $region23: #{up_forward.3} parent=5 // pred_region
      // Predicated region
      $region25: #{up_forward.3} parent=23 // pred_check
        %p128 = pneg %p29
      $region26: #{up_forward.3} parent=23 // pred_check_branch
        %130 = sbr.rel (%p128) target = $region28
      $region27: #{up_forward.3} parent=23 // pred_region
        %s131 = smul.u32 2, %s9
        %p132 = scmp.lt.s32.totalorder %s131, 3
        %s133 = scalar_select %p132, %s131, 3
        %s134 = smul.addr %s133, 4
        %s135 = scalar_lea.vmem %s0, %s134
        %s136 = smul.u32 2, %s9
      $region28: #{up_forward.3} parent=23 // pred_fallthru
        _
    $region24: #{up_forward.3} parent=5 // pred_fallthru
      _
    %p137 = scmp.le.s32.totalorder 1, %s9
    %p138 = scmp.lt.s32.totalorder %s9, 3
    %p139 = pnand %p137, %p138
    %p140 = pneg %p139
    // Predicated region
    $region29: #{up_forward.3} parent=5 // pred_check
      _
    $region30: #{up_forward.3} parent=5 // pred_check_branch
      %142 = sbr.rel (%p139) target = $region32
    $region31: #{up_forward.3} parent=5 // pred_region
      %s143 = ssub.s32 %s9, 1
      %s144 = smul.u32 2, %s14
      %p145 = scmp.lt.s32.totalorder %s144, 3
      %s146 = scalar_select %p145, %s144, 3
      %s147 = smul.addr %s146, 4
      %s148 = scalar_lea.vmem %s0, %s147
      %p149 = pneg %p35
      %p150 = pneg %p32
      %p151 = pneg %p56
      %p152 = pneg %p53
      %p153 = pneg %p77
      %p154 = pneg %p74
      %p155 = pneg %p103
      %p156 = pneg %p100
      %s157 = smul.u32 2, %s14
      %p158 = scmp.lt.s32.totalorder %s157, 3
      %s159 = scalar_select %p158, %s157, 3
      %s160 = smul.addr %s159, 8
      %s161 = scalar_lea.vmem %s3, %s160
      %s162 = smul.u32 2, %s14
      %p163 = scmp.lt.s32.totalorder %s162, 3
      %s164 = scalar_select %p163, %s162, 3
      %s165 = smul.addr %s164, 4
      %s166 = scalar_lea.vmem %s0, %s165
      %s167 = smul.u32 2, %s14
      %s168 = smul.u32 2, %s14
      %p169 = scmp.lt.s32.totalorder %s168, 3
      %s170 = scalar_select %p169, %s168, 3
      %s171 = smul.addr %s170, 8
      %s172 = scalar_lea.vmem %s3, %s171
      %s173 = smul.u32 2, %s14
      %v174 = vld [vmem:[%s166] sm:$0xff]
      %v175 = vunpack.c.l.bf16 %v174
      %v176 = vunpack.c.h.bf16 %v174
      %v177 = vld [vmem:[%s1] sm:$0xff]
      %179 = vset.pattern.permute.xlu0 0
      %180 = vperm.xlu0 %179, %v177
      %v181 = vpop.permute.xlu0 %180
      %v183 = vmul.f32 %v175, %v181
      %v184 = vmul.f32 %v176, %v181
      %v185 = vld [vmem:[%s2] sm:$0xff]
      %187 = vset.pattern.permute.xlu0 0
      %188 = vperm.xlu0 %187, %v185
      %v189 = vpop.permute.xlu0 %188
      %v191 = vadd.f32 %v183, %v189
      %v192 = vadd.f32 %v184, %v189
      %v193 = vxor.u32 %v191, 2147483648
      %v194 = vxor.u32 %v192, 2147483648
      %v195 = vmul.f32 %v193, 1.442695
      %v196 = vpow.pop %v195
      %v197 = vmul.f32 %v194, 1.442695
      %v198 = vpow.pop %v197
      %v199 = vadd.f32 %v196, 1.0
      %v200 = vadd.f32 %v198, 1.0
      %v201 = vrcp.pop %v199
      %v202 = vmul.f32 1.0, %v201
      %v203 = vrcp.pop %v200
      %v204 = vmul.f32 1.0, %v203
      %v205 = vmul.f32 %v191, %v202
      %v206 = vmul.f32 %v192, %v204
      %207 = vst [vmem:[%s172] sm:$0xff] %v205
      %208 = vst [vmem:[%s172 + $0x8] sm:$0xff] %v206
      %s209 = smul.u32 2, %s14
      %p210 = scmp.lt.s32.totalorder %s209, 3
      %s211 = scalar_select %p210, %s209, 3
      %s212 = smul.addr %s211, 8
      %s213 = scalar_lea.vmem %s3, %s212
      // Predicated region
      $region33: #{up_forward.3} parent=31 // pred_check
        %p214 = pneg %p100
      $region34: #{up_forward.3} parent=31 // pred_check_branch
        %216 = sbr.rel (%p214) target = $region36
      $region35: #{up_forward.3} parent=31 // pred_region
        %s217 = smul.u32 2, %s14
      $region36: #{up_forward.3} parent=31 // pred_fallthru
        _
    $region32: #{up_forward.3} parent=5 // pred_fallthru
      _
    %p218 = scmp.le.s32.totalorder 2, %s9
    // Predicated region
    $region37: #{up_forward.3} parent=5 // pred_check
      %p219 = pneg %p218
    $region38: #{up_forward.3} parent=5 // pred_check_branch
      %221 = sbr.rel (%p219) target = $region40
    $region39: #{up_forward.3} parent=5 // pred_region
      %s222 = ssub.s32 %s9, 2
      // Predicated region
      $region41: #{up_forward.3} parent=39 // pred_check
        %p223 = pneg %p106
      $region42: #{up_forward.3} parent=39 // pred_check_branch
        %225 = sbr.rel (%p223) target = $region44
      $region43: #{up_forward.3} parent=39 // pred_region
        %s226 = smul.u32 2, %s15
        %p227 = scmp.lt.s32.totalorder %s226, 3
        %s228 = scalar_select %p227, %s226, 3
        %s229 = smul.addr %s228, 8
        %s230 = scalar_lea.vmem %s3, %s229
      $region44: #{up_forward.3} parent=39 // pred_fallthru
        _
    $region40: #{up_forward.3} parent=5 // pred_fallthru
      _
  $region6: #{up_forward.3} parent=0 // loop_footer
    %s13 = sadd.s32 1, %s9
  $region7: #{up_forward.3} parent=0 // loop_footer_branch
    %8 = sbr.rel target = $region3
  $region8: #{up_forward.3} parent=0 // loop_exit
    _

// kernel: up_forward.2
$region0: #{up_forward.2}
  #allocation0 [shape = 'u32[]', space=smem, size = 0x4, offset = 0x4, fixed_abs, tag = 'smem constant byte address 0x4 - core index']
  #allocation1 [shape = 'u32[144,128]{1,0:T(1,128)}', space=vmem, size = 0x12000, scoped, tag = 'internal scratch']
  %s0 = inlined_call_operand.vmem [shape: bf16[36,512], index: 0, kind: input, shape index: {}]
  %s1 = inlined_call_operand.vmem [shape: bf16[8,36], index: 1, kind: input, shape index: {}]
  %s2 = inlined_call_operand.vmem [shape: bf16[8,512], index: 2, kind: output, shape index: {0}]
  %s3 = inlined_call_operand.vmem [shape: f32[2,1,8], index: 3, kind: output, shape index: {1}]
  %s4 = inlined_call_operand.vmem [shape: f32[2,1,8], index: 4, kind: output, shape index: {2}]
  %5 = xla_tuple %s2, %s3, %s4
  %s6 = sld [smem:[#allocation0]]
  $region95: #{up_forward.2} parent=0
    _
  %s8 = ssub.s32 1, %s6
  %s9 = scalar_select 0, %s8, %s6
  $region1: #{up_forward.2} parent=0
    #allocation2 [shape = 'u8[40960]{0}', space=vmem, size = 0xa000, scoped, tag = 'input window, operand 0']
    loop: start=0, step=1, limit=4
    $region2: #{up_forward.2} parent=1 // loop_pre_header
      _
    $region3: #{up_forward.2} parent=1 // loop_header
      %s11 = sphi 0, %s15
      %p12 = scmp.ge.s32.totalorder %s11, 4
      %s21 = sphi 0, %s23
      %s24 = sphi 0, %s21
      %s25 = sphi 0, %s24
      %s41 = sphi 0, %s25
      %s45 = sphi 0, %s45
      %s47 = sphi 0, %s45
      %s48 = sphi 0, %s47
      %s62 = sphi 0, %s48
      %s68 = sphi 0, %s70
      %s71 = sphi 0, %s68
      %s72 = sphi 0, %s71
      %s88 = sphi 0, %s72
      %s94 = sphi 0, %s96
      %s97 = sphi 0, %s94
      %s98 = sphi 0, %s97
      %s114 = sphi 0, %s98
      %s120 = sphi 0, %s122
      %s123 = sphi 0, %s120
      %s124 = sphi 0, %s123
      %s140 = sphi 0, %s124
    $region4: #{up_forward.2} parent=1 // loop_header_branch
      %14 = sbr.rel (%p12) target = $region8
    $region5: #{up_forward.2} parent=1 // loop_body
      %s16 = ssub.s32 %s11, 1
      %s17 = ssub.s32 %s11, 2
      %s18 = sadd.s32 %s11, 1
      %s19 = ssub.s32 %s11, %s18
      %p20 = scmp.eq.s32.totalorder %s19, 0
      %s22 = sadd.s32 %s21, 1
      %s23 = scalar_select %p20, %s21, %s22
      %p26 = pneg %p20
      %p27 = scmp.eq.s32.totalorder %s11, 1
      %p28 = por %p26, %p27
      %p29 = scmp.ne.s32.totalorder %s21, %s24
      %p30 = scmp.eq.s32.totalorder %s11, 0
      %p31 = por %p29, %p30
      %p32 = scmp.ne.s32.totalorder %s21, %s24
      %p33 = scmp.eq.s32.totalorder %s16, 1
      %p34 = por %p32, %p33
      %p35 = scmp.ne.s32.totalorder %s24, %s25
      %p36 = scmp.eq.s32.totalorder %s16, 0
      %p37 = por %p35, %p36
      %p38 = scmp.ne.s32.totalorder %s24, %s25
      %p39 = scmp.eq.s32.totalorder %s17, 1
      %p40 = por %p38, %p39
      %p42 = scmp.ne.s32.totalorder %s25, %s41
      %p43 = scmp.eq.s32.totalorder %s17, 0
      %p44 = por %p42, %p43
      %s46 = sadd.s32 %s45, 1
      %p49 = scmp.eq.s32.totalorder %s11, 1
      %p50 = scmp.ne.s32.totalorder %s45, %s47
      %p51 = scmp.eq.s32.totalorder %s11, 0
      %p52 = por %p50, %p51
      %p53 = scmp.ne.s32.totalorder %s45, %s47
      %p54 = scmp.eq.s32.totalorder %s16, 1
      %p55 = por %p53, %p54
      %p56 = scmp.ne.s32.totalorder %s47, %s48
      %p57 = scmp.eq.s32.totalorder %s16, 0
      %p58 = por %p56, %p57
      %p59 = scmp.ne.s32.totalorder %s47, %s48
      %p60 = scmp.eq.s32.totalorder %s17, 1
      %p61 = por %p59, %p60
      %p63 = scmp.ne.s32.totalorder %s48, %s62
      %p64 = scmp.eq.s32.totalorder %s17, 0
      %p65 = por %p63, %p64
      %s66 = ssub.s32 %s11, %s18
      %p67 = scmp.eq.s32.totalorder %s66, 0
      %s69 = sadd.s32 %s68, 1
      %s70 = scalar_select %p67, %s68, %s69
      %p73 = pneg %p67
      %p74 = scmp.eq.s32.totalorder %s11, 1
      %p75 = por %p73, %p74
      %p76 = scmp.ne.s32.totalorder %s68, %s71
      %p77 = scmp.eq.s32.totalorder %s11, 0
      %p78 = por %p76, %p77
      %p79 = scmp.ne.s32.totalorder %s68, %s71
      %p80 = scmp.eq.s32.totalorder %s16, 1
      %p81 = por %p79, %p80
      %p82 = scmp.ne.s32.totalorder %s71, %s72
      %p83 = scmp.eq.s32.totalorder %s16, 0
      %p84 = por %p82, %p83
      %p85 = scmp.ne.s32.totalorder %s71, %s72
      %p86 = scmp.eq.s32.totalorder %s17, 1
      %p87 = por %p85, %p86
      %p89 = scmp.ne.s32.totalorder %s72, %s88
      %p90 = scmp.eq.s32.totalorder %s17, 0
      %p91 = por %p89, %p90
      %s92 = ssub.s32 %s11, %s18
      %p93 = scmp.eq.s32.totalorder %s92, 0
      %s95 = sadd.s32 %s94, 1
      %s96 = scalar_select %p93, %s94, %s95
      %p99 = pneg %p93
      %p100 = scmp.eq.s32.totalorder %s11, 1
      %p101 = por %p99, %p100
      %p102 = scmp.ne.s32.totalorder %s94, %s97
      %p103 = scmp.eq.s32.totalorder %s11, 0
      %p104 = por %p102, %p103
      %p105 = scmp.ne.s32.totalorder %s94, %s97
      %p106 = scmp.eq.s32.totalorder %s16, 1
      %p107 = por %p105, %p106
      %p108 = scmp.ne.s32.totalorder %s97, %s98
      %p109 = scmp.eq.s32.totalorder %s16, 0
      %p110 = por %p108, %p109
      %p111 = scmp.ne.s32.totalorder %s97, %s98
      %p112 = scmp.eq.s32.totalorder %s17, 1
      %p113 = por %p111, %p112
      %p115 = scmp.ne.s32.totalorder %s98, %s114
      %p116 = scmp.eq.s32.totalorder %s17, 0
      %p117 = por %p115, %p116
      %s118 = ssub.s32 %s11, %s18
      %p119 = scmp.eq.s32.totalorder %s118, 0
      %s121 = sadd.s32 %s120, 1
      %s122 = scalar_select %p119, %s120, %s121
      %p125 = pneg %p119
      %p126 = scmp.eq.s32.totalorder %s11, 1
      %p127 = por %p125, %p126
      %p128 = scmp.ne.s32.totalorder %s120, %s123
      %p129 = scmp.eq.s32.totalorder %s11, 0
      %p130 = por %p128, %p129
      %p131 = scmp.ne.s32.totalorder %s120, %s123
      %p132 = scmp.eq.s32.totalorder %s16, 1
      %p133 = por %p131, %p132
      %p134 = scmp.ne.s32.totalorder %s123, %s124
      %p135 = scmp.eq.s32.totalorder %s16, 0
      %p136 = por %p134, %p135
      %p137 = scmp.ne.s32.totalorder %s123, %s124
      %p138 = scmp.eq.s32.totalorder %s17, 1
      %p139 = por %p137, %p138
      %p141 = scmp.ne.s32.totalorder %s124, %s140
      %p142 = scmp.eq.s32.totalorder %s17, 0
      %p143 = por %p141, %p142
      %p144 = scmp.le.s32.totalorder 1, %s11
      %p145 = scmp.lt.s32.totalorder %s11, 3
      %p146 = pnand %p144, %p145
      %p147 = pneg %p146
      // Predicated region
      $region9: #{up_forward.2} parent=5 // pred_check
        _
      $region10: #{up_forward.2} parent=5 // pred_check_branch
        %149 = sbr.rel (%p146) target = $region12
      $region11: #{up_forward.2} parent=5 // pred_region
        %s150 = ssub.s32 %s11, 1
        // Predicated region
        $region13: #{up_forward.2} parent=11 // pred_check
          %p151 = pneg %p58
        $region14: #{up_forward.2} parent=11 // pred_check_branch
          %153 = sbr.rel (%p151) target = $region16
        $region15: #{up_forward.2} parent=11 // pred_region
          _
        $region16: #{up_forward.2} parent=11 // pred_fallthru
          _
      $region12: #{up_forward.2} parent=5 // pred_fallthru
        _
      %p154 = scmp.lt.s32.totalorder %s11, 2
      // Predicated region
      $region17: #{up_forward.2} parent=5 // pred_check
        %p155 = pneg %p154
      $region18: #{up_forward.2} parent=5 // pred_check_branch
        %157 = sbr.rel (%p155) target = $region20
      $region19: #{up_forward.2} parent=5 // pred_region
        // Predicated region
        $region21: #{up_forward.2} parent=19 // pred_check
          %p158 = pneg %p31
        $region22: #{up_forward.2} parent=19 // pred_check_branch
          %160 = sbr.rel (%p158) target = $region24
        $region23: #{up_forward.2} parent=19 // pred_region
          %s161 = sand.u32 %s21, 1
          %s162 = sand.u32 %s21, 1
          %s163 = smul.addr %s162, 40
          %s164 = scalar_lea.vmem [#allocation2], %s163
          %s165 = smul.u32 2, %s11
          %s166 = smul.addr %s165, 4
          %s167 = scalar_lea.vmem %s0, %s166
          // Predicated region
          $region25: #{up_forward.2} parent=23 // pred_check
            _
          $region26: #{up_forward.2} parent=23 // pred_check_branch
            %169 = sbr.rel (0) target = $region28
          $region27: #{up_forward.2} parent=23 // pred_region
            // Predicated region
            $region29: #{up_forward.2} parent=27 // pred_check
              _
            $region30: #{up_forward.2} parent=27 // pred_check_branch
              %171 = sbr.rel (0) target = $region32
            $region31: #{up_forward.2} parent=27 // pred_region
              // Predicated region
              $region44: #{up_forward.2} parent=31 // pred_check
                _
              $region45: #{up_forward.2} parent=31 // pred_check_branch
                %195 = sbr.rel (0) target = $region47
              $region46: #{up_forward.2} parent=31 // pred_region
                loop: start=0, step=1, limit=1
                $region48: #{up_forward.2} parent=46 // loop_pre_header
                  _
                $region49: #{up_forward.2} parent=46 // loop_header
                  %s197 = sphi 0, %s201
                  %p198 = scmp.ge.s32.totalorder %s197, 1
                  %s202 = sphi %s167, %s167
                  %s203 = sphi %s164, %s164
                $region50: #{up_forward.2} parent=46 // loop_header_branch
                  %200 = sbr.rel (%p198) target = $region54
                $region51: #{up_forward.2} parent=46 // loop_body
                  %v204 = vld [vmem:[%s202] sm:$0xff]
                  %205 = vst [vmem:[%s203] sm:$0xff] %v204
                  %v206 = vld [vmem:[%s202 + $0x10] sm:$0xff]
                  %207 = vst [vmem:[%s203 + $0x8] sm:$0xff] %v206
                  %v208 = vld [vmem:[%s202 + $0x20] sm:$0xff]
                  %209 = vst [vmem:[%s203 + $0x10] sm:$0xff] %v208
                  %v210 = vld [vmem:[%s202 + $0x30] sm:$0xff]
                  %211 = vst [vmem:[%s203 + $0x18] sm:$0xff] %v210
                  %v212 = vld [vmem:[%s202 + $0x40] sm:$0xff]
                  %213 = vst [vmem:[%s203 + $0x20] sm:$0xff] %v212
                $region52: #{up_forward.2} parent=46 // loop_footer
                  %s201 = sadd.s32 1, %s197
                $region53: #{up_forward.2} parent=46 // loop_footer_branch
                  %196 = sbr.rel target = $region49
                $region54: #{up_forward.2} parent=46 // loop_exit
                  _
              $region47: #{up_forward.2} parent=31 // pred_fallthru
                _
              // Predicated region
              $region55: #{up_forward.2} parent=31 // pred_check
                _
              $region56: #{up_forward.2} parent=31 // pred_check_branch
                %215 = sbr.rel target = $region58
              $region57: #{up_forward.2} parent=31 // pred_region
                _
              $region58: #{up_forward.2} parent=31 // pred_fallthru
                _
            $region32: #{up_forward.2} parent=27 // pred_fallthru
              _
            // Predicated region
            $region33: #{up_forward.2} parent=27 // pred_check
              _
            $region34: #{up_forward.2} parent=27 // pred_check_branch
              %173 = sbr.rel target = $region36
            $region35: #{up_forward.2} parent=27 // pred_region
              %s175 = ssub.s32 256, 1
              loop: start=0, step=1, limit=1
              $region37: #{up_forward.2} parent=35 // loop_pre_header
                _
              $region38: #{up_forward.2} parent=35 // loop_header
                %s177 = sphi 0, %s181
                %p178 = scmp.ge.s32.totalorder %s177, 1
                %s182 = sphi %s167, %s167
                %s183 = sphi %s164, %s164
              $region39: #{up_forward.2} parent=35 // loop_header_branch
                %180 = sbr.rel (%p178) target = $region43
              $region40: #{up_forward.2} parent=35 // loop_body
                %v184 = vld [vmem:[%s182] sm:%s175]
                %185 = vst [vmem:[%s183] sm:%s175] %v184
                %v186 = vld [vmem:[%s182 + $0x10] sm:%s175]
                %187 = vst [vmem:[%s183 + $0x8] sm:%s175] %v186
                %v188 = vld [vmem:[%s182 + $0x20] sm:%s175]
                %189 = vst [vmem:[%s183 + $0x10] sm:%s175] %v188
                %v190 = vld [vmem:[%s182 + $0x30] sm:%s175]
                %191 = vst [vmem:[%s183 + $0x18] sm:%s175] %v190
                %v192 = vld [vmem:[%s182 + $0x40] sm:%s175]
                %193 = vst [vmem:[%s183 + $0x20] sm:%s175] %v192
              $region41: #{up_forward.2} parent=35 // loop_footer
                %s181 = sadd.s32 1, %s177
              $region42: #{up_forward.2} parent=35 // loop_footer_branch
                %176 = sbr.rel target = $region38
              $region43: #{up_forward.2} parent=35 // loop_exit
                _
            $region36: #{up_forward.2} parent=27 // pred_fallthru
              _
          $region28: #{up_forward.2} parent=23 // pred_fallthru
            _
          %216 = vnop
        $region24: #{up_forward.2} parent=19 // pred_fallthru
          _
      $region20: #{up_forward.2} parent=5 // pred_fallthru
        _
      %p217 = scmp.le.s32.totalorder 1, %s11
      %p218 = scmp.lt.s32.totalorder %s11, 3
      %p219 = pnand %p217, %p218
      %p220 = pneg %p219
      // Predicated region
      $region59: #{up_forward.2} parent=5 // pred_check
        _
      $region60: #{up_forward.2} parent=5 // pred_check_branch
        %222 = sbr.rel (%p219) target = $region62
      $region61: #{up_forward.2} parent=5 // pred_region
        %s223 = ssub.s32 %s11, 1
        %s224 = sand.u32 %s24, 1
        %s225 = sand.u32 %s24, 1
        %s226 = smul.addr %s225, 40
        %s227 = scalar_lea.vmem [#allocation2], %s226
        // Predicated region
        $region63: #{up_forward.2} parent=61 // pred_check
          %p228 = pneg %p37
        $region64: #{up_forward.2} parent=61 // pred_check_branch
          %230 = sbr.rel (%p228) target = $region66
        $region65: #{up_forward.2} parent=61 // pred_region
          _
        $region66: #{up_forward.2} parent=61 // pred_fallthru
          _
        %s231 = sand.u32 %s24, 1
        %s232 = sand.u32 %s24, 1
        %s233 = smul.addr %s232, 40
        %s234 = scalar_lea.vmem [#allocation2], %s233
        %p235 = pneg %p37
        %p236 = pneg %p34
        %p237 = pneg %p58
        %p238 = pneg %p55
        %p239 = pneg %p84
        %p240 = pneg %p81
        %s241 = smul.u32 2, %s16
        %p242 = scmp.lt.s32.totalorder %s241, 3
        %s243 = scalar_select %p242, %s241, 3
        %s244 = smul.addr %s243, 4
        %s245 = scalar_lea.vmem %s2, %s244
        %p246 = pneg %p110
        %p247 = pneg %p107
        %p248 = scmp.lt.s32.totalorder %s16, 1
        %s249 = scalar_select %p248, %s16, 1
        %s250 = scalar_lea.vmem %s3, %s249
        %p251 = pneg %p136
        %p252 = pneg %p133
        %p253 = scmp.lt.s32.totalorder %s16, 1
        %s254 = scalar_select %p253, %s16, 1
        %s255 = scalar_lea.vmem %s4, %s254
        %s256 = smul.u32 2, %s16
        %s257 = smul.u32 2, %s16
        %p258 = scmp.lt.s32.totalorder %s257, 3
        %s259 = scalar_select %p258, %s257, 3
        %s260 = smul.addr %s259, 4
        %s261 = scalar_lea.vmem %s2, %s260
        %s262 = smul.u32 2, %s16
        %p263 = scmp.lt.s32.totalorder %s16, 1
        %s264 = scalar_select %p263, %s16, 1
        %s265 = scalar_lea.vmem %s3, %s264
        %p266 = scmp.lt.s32.totalorder %s16, 1
        %s267 = scalar_select %p266, %s16, 1
        %s268 = scalar_lea.vmem %s4, %s267
        %v270 = vld [vmem:[%s1] sm:$0xf]
        %v271 = vld [vmem:[%s227] sm:$0xff]
        %v272 = vld [vmem:[%s227 + $0x8] sm:$0xff]
        %v273 = vld [vmem:[%s227 + $0x10] sm:$0xff]
        %v274 = vld [vmem:[%s227 + $0x18] sm:$0xff]
        %v275 = vld [vmem:[%s227 + $0x20] sm:$0x33]
        %v281 = vunpack.c.l.b16 %v271
        %v282 = vunpack.c.h.b16 %v271
        %v283 = vunpack.c.l.b16 %v272
        %v284 = vunpack.c.h.b16 %v272
        %v285 = vunpack.c.l.b16 %v273
        %v286 = vunpack.c.h.b16 %v273
        %v287 = vunpack.c.l.b16 %v274
        %v288 = vunpack.c.h.b16 %v274
        %v289 = vunpack.c.l.b16 %v275
        %v290 = vunpack.c.h.b16 %v275
        %v291 = vpack.c.b16 %v283, %v281
        %v292 = vpack.c.b16 %v284, %v282
        %v293 = vpack.c.b16 %v287, %v285
        %v294 = vpack.c.b16 %v288, %v286
        %v295 = vpack.c.b16 %v289, %v289
        %v296 = vpack.c.b16 %v290, %v290
        %vm301 = vcmask 293888
        %v303 = vsel %vm301, %v270, 0
        %vm305 = vcmask 1041408
        %v307 = vsel %vm305, %v295, 0
        %v310 = vsel %vm305, %v296, 0
        %312 = vmatprep.subr.bf16.mxu0 0
        %313 = vmatpush1.bf16.msra.mxu0 0
        %314 = vmatprep.subr.bf16.mxu0 0
        %315 = vmatpush1.bf16.msra.mxu0 0
        %316 = vmatprep.subr.bf16.mxu0 0
        %317 = vmatpush1.bf16.msra.mxu0 0
        %318 = vmatprep.subr.bf16.mxu0 0
        %319 = vmatpush1.bf16.msra.mxu0 0
        %320 = vmatprep.subr.bf16.mxu0 0
        %321 = vmatpush1.bf16.msra.mxu0 0
        %322 = vmatprep.subr.bf16.mxu0 %v310
        %323 = vmatpush1.bf16.msra.mxu0 %v307
        %324 = vmatprep.subr.bf16.mxu0 %v294
        %325 = vmatpush1.bf16.msra.mxu0 %v293
        %326 = vmatprep.subr.bf16.mxu0 %v292
        %327 = vmatpush1.bf16.msra.mxu0 %v291
        %328 = vmatprep.subr.bf16.mxu0 0
        %329 = vmatpush2.bf16.msra.mxu0 0
        %330 = vmatprep.subr.bf16.mxu0 0
        %331 = vmatpush2.bf16.msra.mxu0 0
        %332 = vmatprep.subr.bf16.mxu0 0
        %333 = vmatpush2.bf16.msra.mxu0 0
        %334 = vmatprep.subr.bf16.mxu0 0
        %335 = vmatpush2.bf16.msra.mxu0 0
        %336 = vmatprep.subr.bf16.mxu0 0
        %337 = vmatpush2.bf16.msra.mxu0 0
        %338 = vmatprep.subr.bf16.mxu0 0
        %339 = vmatpush2.bf16.msra.mxu0 0
        %340 = vmatprep.subr.bf16.mxu0 0
        %341 = vmatpush2.bf16.msra.mxu0 0
        %342 = vmatprep.subr.bf16.mxu0 0
        %343 = vmatpush2.bf16.msra.mxu0 0
        %344 = vmatprep.mubr.bf16.mxu0 0
        %345 = vmatmul.mubr.bf16.gmra.mxu0 %v303
        %v346 = vpop.f32.mrf.mxu0
        %v347 = vadd.f32 0.0, %v346
        %v348 = vpop.f32.mrf.mxu0
        %v349 = vadd.f32 0.0, %v348
        %v350 = vpop.f32.mrf.mxu0
        %v351 = vpop.f32.mrf.mxu0
        %352 = vdwg.mxu0
        %v353 = vpack.c.bf16 %v347, %v347
        %v354 = vpack.c.bf16 %v349, %v349
        %v357 = vunpack.c.l.b16 %v353
        %v358 = vunpack.c.l.b16 %v354
        %v359 = vpack.c.b16 %v358, %v357
        %361 = vst [vmem:[%s261] sm:$0xff] %v359
        %v362 = vadd.f32 %v347, %v349
        %363 = vadd.xlane.f32.xlu0 %v362
        %v364 = vpop.xlane.xlu0 %363
        %v366 = vlaneseq
        %v367 = vand.u32 %v366, 127
        %v368 = vlaneseq
        %v369 = vshrl.u32 %v368, 7
        %v370 = vsub.s32 %v367, %v369
        %v371 = vrot.slane %v364, %v370
        %vm373 = vcmask 57344
        %374 = vst.msk [vmem:[%s265] sm:$0x1] %vm373, %v371
        %v375 = vmul.f32 %v347, %v347
        %v376 = vmul.f32 %v349, %v349
        %v377 = vadd.f32 %v375, %v376
        %378 = vadd.xlane.f32.xlu0 %v377
        %v379 = vpop.xlane.xlu0 %378
        %v381 = vlaneseq
        %v382 = vshrl.u32 %v381, 7
        %v383 = vsub.s32 %v367, %v382
        %v384 = vrot.slane %v379, %v383
        %386 = vst.msk [vmem:[%s268] sm:$0x1] %vm373, %v384
        %s387 = smul.u32 2, %s16
        %p388 = scmp.lt.s32.totalorder %s387, 3
        %s389 = scalar_select %p388, %s387, 3
        %s390 = smul.addr %s389, 4
        %s391 = scalar_lea.vmem %s2, %s390
        %p392 = scmp.lt.s32.totalorder %s16, 1
        %s393 = scalar_select %p392, %s16, 1
        %s394 = scalar_lea.vmem %s3, %s393
        %p395 = scmp.lt.s32.totalorder %s16, 1
        %s396 = scalar_select %p395, %s16, 1
        %s397 = scalar_lea.vmem %s4, %s396
        // Predicated region
        $region67: #{up_forward.2} parent=61 // pred_check
          %p398 = pneg %p81
        $region68: #{up_forward.2} parent=61 // pred_check_branch
          %400 = sbr.rel (%p398) target = $region70
        $region69: #{up_forward.2} parent=61 // pred_region
          %s401 = smul.u32 2, %s16
        $region70: #{up_forward.2} parent=61 // pred_fallthru
          _
        // Predicated region
        $region71: #{up_forward.2} parent=61 // pred_check
          %p402 = pneg %p107
        $region72: #{up_forward.2} parent=61 // pred_check_branch
          %404 = sbr.rel (%p402) target = $region74
        $region73: #{up_forward.2} parent=61 // pred_region
          _
        $region74: #{up_forward.2} parent=61 // pred_fallthru
          _
        // Predicated region
        $region75: #{up_forward.2} parent=61 // pred_check
          %p405 = pneg %p133
        $region76: #{up_forward.2} parent=61 // pred_check_branch
          %407 = sbr.rel (%p405) target = $region78
        $region77: #{up_forward.2} parent=61 // pred_region
          _
        $region78: #{up_forward.2} parent=61 // pred_fallthru
          _
      $region62: #{up_forward.2} parent=5 // pred_fallthru
        _
      %p408 = scmp.le.s32.totalorder 2, %s11
      // Predicated region
      $region79: #{up_forward.2} parent=5 // pred_check
        %p409 = pneg %p408
      $region80: #{up_forward.2} parent=5 // pred_check_branch
        %411 = sbr.rel (%p409) target = $region82
      $region81: #{up_forward.2} parent=5 // pred_region
        %s412 = ssub.s32 %s11, 2
        // Predicated region
        $region83: #{up_forward.2} parent=81 // pred_check
          %p413 = pneg %p87
        $region84: #{up_forward.2} parent=81 // pred_check_branch
          %415 = sbr.rel (%p413) target = $region86
        $region85: #{up_forward.2} parent=81 // pred_region
          %s416 = smul.u32 2, %s17
          %p417 = scmp.lt.s32.totalorder %s416, 3
          %s418 = scalar_select %p417, %s416, 3
          %s419 = smul.addr %s418, 4
          %s420 = scalar_lea.vmem %s2, %s419
        $region86: #{up_forward.2} parent=81 // pred_fallthru
          _
        // Predicated region
        $region87: #{up_forward.2} parent=81 // pred_check
          %p421 = pneg %p113
        $region88: #{up_forward.2} parent=81 // pred_check_branch
          %423 = sbr.rel (%p421) target = $region90
        $region89: #{up_forward.2} parent=81 // pred_region
          %p424 = scmp.lt.s32.totalorder %s17, 1
          %s425 = scalar_select %p424, %s17, 1
          %s426 = scalar_lea.vmem %s3, %s425
        $region90: #{up_forward.2} parent=81 // pred_fallthru
          _
        // Predicated region
        $region91: #{up_forward.2} parent=81 // pred_check
          %p427 = pneg %p139
        $region92: #{up_forward.2} parent=81 // pred_check_branch
          %429 = sbr.rel (%p427) target = $region94
        $region93: #{up_forward.2} parent=81 // pred_region
          %p430 = scmp.lt.s32.totalorder %s17, 1
          %s431 = scalar_select %p430, %s17, 1
          %s432 = scalar_lea.vmem %s4, %s431
        $region94: #{up_forward.2} parent=81 // pred_fallthru
          _
      $region82: #{up_forward.2} parent=5 // pred_fallthru
        _
    $region6: #{up_forward.2} parent=1 // loop_footer
      %s15 = sadd.s32 1, %s11
    $region7: #{up_forward.2} parent=1 // loop_footer_branch
      %10 = sbr.rel target = $region3
    $region8: #{up_forward.2} parent=1 // loop_exit
      _

</llo_original>
